<compile_context>
chip_gen: v7x
topology: tpu7x:2x2x1
jax: 0.10.0
libtpu: 0.0.40
codegen_flags: <defaults>
</compile_context>

<pallas_src>
import functools

import jax
import jax.numpy as jnp
from jax.experimental import pallas as pl
from jax.experimental.pallas import tpu as pltpu

# ---- configuration (mirrors FKDLoss(nBlocks, gamma, T, num_labels, hidden)) ----
NBLOCKS = 4
GAMMA = 0.5
T = 2.0
NUM_LABELS = 4        # > 1  -> BCE-with-logits branch of the module
HIDDEN = 32
B = 2                 # batch
SEQ = 8               # sequence length of hidden features
K = NBLOCKS - 1       # number of early exits
LANES = 128


def fkd_loss_kernel(logit_ref, hid_ref, o_ref, *, gamma, temp, k):
    # logit_ref: (K+3, B, C)  rows = [targets, outputs, soft, hw_0 .. hw_{K-1}]
    # hid_ref:   (K+1, rows, 128) rows-slab = [last_hidden, each_layer_0 .. K-1]
    pk = logit_ref[...].astype(jnp.float32)
    t = pk[0]                                    # (B, C) targets
    n_logit = float(t.size)                      # B * C

    # ---- one batched stable BCE-with-logits pass over [outputs, soft, hw_*] ----
    # (the 'soft' row is discarded; it is a single extra (B,C) of VPU work that
    #  buys a fully contiguous, single elementwise pass)
    logits_all = pk[1:]                          # (K+2, B, C)
    bce_all = (jnp.maximum(logits_all, 0.0) - logits_all * t[None]
               + jnp.log1p(jnp.exp(-jnp.abs(logits_all))))
    s_bce_last = jnp.sum(bce_all[0])             # BCE(outputs, targets), summed
    s_bce_hw = jnp.sum(bce_all[2:])              # sum_i BCE(hw_i, targets), summed

    last_loss = s_bce_last / n_logit
    m_loss = (1.0 - gamma) * s_bce_hw / n_logit

    # ---- fused teacher + student log-softmax (one max/exp/sum/log pass) ----
    z = pk[2:] / temp                            # (K+1, B, C): [soft, hw_*]
    z = z - jnp.max(z, axis=-1, keepdims=True)
    logp_all = z - jnp.log(jnp.sum(jnp.exp(z), axis=-1, keepdims=True))
    p = jnp.exp(logp_all[0])                     # teacher probs (B, C)

    # sum_i KL(logq_i || p) with 'mean' reduction:
    #   sum_i sum(p*(logp - logq_i)) / n = (K*sum(p*logp) - sum_i sum(p*logq_i)) / n
    w_all = p[None] * logp_all                   # (K+1, B, C): row0 = p*logp
    s_plogp = jnp.sum(w_all[0])
    s_plogq = jnp.sum(w_all[1:])
    kld_sum = (float(k) * s_plogp - s_plogq) / n_logit

    d_loss = kld_sum * gamma * temp * temp
    kls = kld_sum / 12.0   # hard-coded /12 exactly as in the reference module

    # ---- sum_i MSE(last_hidden, each_layer_i) * 1e-6 (shared normalizer) ----
    hid = hid_ref[...].astype(jnp.float32)       # (K+1, rows, 128)
    diff = hid[1:] - hid[0:1]                    # broadcast last_hidden over K
    n_hidden = float(hid[0].size)                # B * S * H per head
    hf_loss = (jnp.sum(diff * diff) / n_hidden) * 1e-6

    loss = last_loss + d_loss + m_loss + hf_loss

    # six cheap scalar stores into SMEM (no VMEM slab / concat epilogue)
    o_ref[0] = loss
    o_ref[1] = last_loss
    o_ref[2] = d_loss
    o_ref[3] = m_loss
    o_ref[4] = hf_loss
    o_ref[5] = kls


@jax.jit
def fkd_loss(outputs, targets, soft_targets, highway_outputs,
             last_hidden_feature, eachlayer_hidden_feature_all):
    k = highway_outputs.shape[0]
    n_hidden = last_hidden_feature.size
    assert n_hidden % LANES == 0, "hidden features must flatten to a multiple of 128"
    rows = n_hidden // LANES

    # Pack the four tiny logit tensors into one slab -> one DMA, one VMEM tile.
    logit_pk = jnp.concatenate(
        [targets[None], outputs[None], soft_targets[None], highway_outputs], axis=0)
    # Pack the hidden features lane-dense into one slab -> one DMA.
    hid_pk = jnp.concatenate(
        [last_hidden_feature.reshape(1, rows, LANES),
         eachlayer_hidden_feature_all.reshape(k, rows, LANES)], axis=0)

    kernel = functools.partial(fkd_loss_kernel, gamma=GAMMA, temp=T, k=k)
    out = pl.pallas_call(
        kernel,
        out_shape=jax.ShapeDtypeStruct((6,), jnp.float32),
        in_specs=[pl.BlockSpec(memory_space=pltpu.MemorySpace.VMEM)] * 2,
        out_specs=pl.BlockSpec(memory_space=pltpu.MemorySpace.SMEM),
    )(logit_pk, hid_pk)
    # (loss, last_loss, d_loss, m_loss, hf_loss, kls) stacked as a (6,) array.
    return out


if __name__ == "__main__":
    key = jax.random.PRNGKey(0)
    ks = jax.random.split(key, 6)

    outputs = jax.random.normal(ks[0], (B, NUM_LABELS), jnp.float32)
    targets = (jax.random.uniform(ks[1], (B, NUM_LABELS)) > 0.5).astype(jnp.float32)
    soft_targets = jax.random.normal(ks[2], (B, NUM_LABELS), jnp.float32)
    highway_outputs = jax.random.normal(ks[3], (K, B, NUM_LABELS), jnp.float32)
    last_hidden_feature = jax.random.normal(ks[4], (B, SEQ, HIDDEN), jnp.float32)
    eachlayer_hidden = jax.random.normal(ks[5], (K, B, SEQ, HIDDEN), jnp.float32)

    res = fkd_loss(outputs, targets, soft_targets, highway_outputs,
                   last_hidden_feature, eachlayer_hidden)
    res = jax.block_until_ready(res)

    loss, l_loss, d_loss, m_loss, hf_loss, kls = res
    assert res.shape == (6,)
    assert bool(jnp.all(jnp.isfinite(res)))
    print("KERNEL_OK")
</pallas_src>

<mosaic_0001>
module attributes {stable_mosaic.version = 11 : i64} {
  func.func @fkd_loss_kernel(%arg0: memref<6x2x4xf32, #tpu.memory_space<vmem>>, %arg1: memref<4x4x128xf32, #tpu.memory_space<vmem>>, %arg2: memref<6xf32, #tpu.memory_space<smem>>) attributes {dimension_semantics = [], scalar_prefetch = 0 : i64, scratch_operands = 0 : i64, tpu.core_type = #tpu.core_type<tc>} {
    %c0 = arith.constant 0 : index
    %c0_0 = arith.constant 0 : index
    %c0_1 = arith.constant 0 : index
    %0 = vector.load %arg0[%c0, %c0_0, %c0_1] : memref<6x2x4xf32, #tpu.memory_space<vmem>>, vector<6x2x4xf32>
    %1 = vector.extract_strided_slice %0 {offsets = [0, 0, 0], sizes = [1, 2, 4], strides = [1, 1, 1]} : vector<6x2x4xf32> to vector<1x2x4xf32>
    %2 = vector.shape_cast %1 : vector<1x2x4xf32> to vector<2x4xf32>
    %3 = vector.extract_strided_slice %0 {offsets = [1, 0, 0], sizes = [5, 2, 4], strides = [1, 1, 1]} : vector<6x2x4xf32> to vector<5x2x4xf32>
    %cst = arith.constant 0.000000e+00 : f32
    %4 = vector.broadcast %cst : f32 to vector<5x2x4xf32>
    %5 = arith.maximumf %3, %4 : vector<5x2x4xf32>
    %6 = vector.shape_cast %2 : vector<2x4xf32> to vector<1x2x4xf32>
    %7 = vector.broadcast %6 : vector<1x2x4xf32> to vector<5x2x4xf32>
    %8 = arith.mulf %3, %7 : vector<5x2x4xf32>
    %9 = arith.subf %5, %8 : vector<5x2x4xf32>
    %10 = math.absf %3 : vector<5x2x4xf32>
    %cst_2 = arith.constant 0.000000e+00 : f32
    %11 = vector.broadcast %cst_2 : f32 to vector<5x2x4xf32>
    %12 = arith.subf %11, %10 : vector<5x2x4xf32>
    %13 = math.exp %12 : vector<5x2x4xf32>
    %14 = math.log1p %13 : vector<5x2x4xf32>
    %15 = arith.addf %9, %14 : vector<5x2x4xf32>
    %16 = vector.extract_strided_slice %15 {offsets = [0, 0, 0], sizes = [1, 2, 4], strides = [1, 1, 1]} : vector<5x2x4xf32> to vector<1x2x4xf32>
    %17 = vector.shape_cast %16 : vector<1x2x4xf32> to vector<2x4xf32>
    %18 = vector.shape_cast %17 : vector<2x4xf32> to vector<1x2x4xf32>
    %cst_3 = arith.constant dense<0.000000e+00> : vector<1xf32>
    %19 = vector.multi_reduction <add>, %18, %cst_3 [1, 2] : vector<1x2x4xf32> to vector<1xf32>
    %20 = vector.shape_cast %19 : vector<1xf32> to vector<1x1x1xf32>
    %21 = vector.extract %20[0, 0, 0] : f32 from vector<1x1x1xf32>
    %22 = vector.extract_strided_slice %15 {offsets = [2, 0, 0], sizes = [3, 2, 4], strides = [1, 1, 1]} : vector<5x2x4xf32> to vector<3x2x4xf32>
    %23 = vector.shape_cast %22 : vector<3x2x4xf32> to vector<1x3x2x4xf32>
    %cst_4 = arith.constant dense<0.000000e+00> : vector<1xf32>
    %24 = vector.multi_reduction <add>, %23, %cst_4 [1, 2, 3] : vector<1x3x2x4xf32> to vector<1xf32>
    %25 = vector.shape_cast %24 : vector<1xf32> to vector<1x1x1x1xf32>
    %26 = vector.extract %25[0, 0, 0, 0] : f32 from vector<1x1x1x1xf32>
    %cst_5 = arith.constant 8.000000e+00 : f32
    %27 = arith.divf %21, %cst_5 : f32
    %cst_6 = arith.constant 5.000000e-01 : f32
    %28 = arith.mulf %cst_6, %26 : f32
    %cst_7 = arith.constant 8.000000e+00 : f32
    %29 = arith.divf %28, %cst_7 : f32
    %30 = vector.extract_strided_slice %0 {offsets = [2, 0, 0], sizes = [4, 2, 4], strides = [1, 1, 1]} : vector<6x2x4xf32> to vector<4x2x4xf32>
    %cst_8 = arith.constant 2.000000e+00 : f32
    %31 = vector.broadcast %cst_8 : f32 to vector<4x2x4xf32>
    %32 = arith.divf %30, %31 : vector<4x2x4xf32>
    %cst_9 = arith.constant dense<0xFF800000> : vector<4x2xf32>
    %33 = vector.multi_reduction <maximumf>, %32, %cst_9 [2] : vector<4x2x4xf32> to vector<4x2xf32>
    %34 = vector.shape_cast %33 : vector<4x2xf32> to vector<4x2x1xf32>
    %35 = vector.broadcast %34 : vector<4x2x1xf32> to vector<4x2x4xf32>
    %36 = arith.subf %32, %35 : vector<4x2x4xf32>
    %37 = math.exp %36 : vector<4x2x4xf32>
    %cst_10 = arith.constant dense<0.000000e+00> : vector<4x2xf32>
    %38 = vector.multi_reduction <add>, %37, %cst_10 [2] : vector<4x2x4xf32> to vector<4x2xf32>
    %39 = vector.shape_cast %38 : vector<4x2xf32> to vector<4x2x1xf32>
    %40 = math.log %39 : vector<4x2x1xf32>
    %41 = vector.broadcast %40 : vector<4x2x1xf32> to vector<4x2x4xf32>
    %42 = arith.subf %36, %41 : vector<4x2x4xf32>
    %43 = vector.extract_strided_slice %42 {offsets = [0, 0, 0], sizes = [1, 2, 4], strides = [1, 1, 1]} : vector<4x2x4xf32> to vector<1x2x4xf32>
    %44 = vector.shape_cast %43 : vector<1x2x4xf32> to vector<2x4xf32>
    %45 = math.exp %44 : vector<2x4xf32>
    %46 = vector.shape_cast %45 : vector<2x4xf32> to vector<1x2x4xf32>
    %47 = vector.broadcast %46 : vector<1x2x4xf32> to vector<4x2x4xf32>
    %48 = arith.mulf %47, %42 : vector<4x2x4xf32>
    %49 = vector.extract_strided_slice %48 {offsets = [0, 0, 0], sizes = [1, 2, 4], strides = [1, 1, 1]} : vector<4x2x4xf32> to vector<1x2x4xf32>
    %50 = vector.shape_cast %49 : vector<1x2x4xf32> to vector<2x4xf32>
    %51 = vector.shape_cast %50 : vector<2x4xf32> to vector<1x2x4xf32>
    %cst_11 = arith.constant dense<0.000000e+00> : vector<1xf32>
    %52 = vector.multi_reduction <add>, %51, %cst_11 [1, 2] : vector<1x2x4xf32> to vector<1xf32>
    %53 = vector.shape_cast %52 : vector<1xf32> to vector<1x1x1xf32>
    %54 = vector.extract %53[0, 0, 0] : f32 from vector<1x1x1xf32>
    %55 = vector.extract_strided_slice %48 {offsets = [1, 0, 0], sizes = [3, 2, 4], strides = [1, 1, 1]} : vector<4x2x4xf32> to vector<3x2x4xf32>
    %56 = vector.shape_cast %55 : vector<3x2x4xf32> to vector<1x3x2x4xf32>
    %cst_12 = arith.constant dense<0.000000e+00> : vector<1xf32>
    %57 = vector.multi_reduction <add>, %56, %cst_12 [1, 2, 3] : vector<1x3x2x4xf32> to vector<1xf32>
    %58 = vector.shape_cast %57 : vector<1xf32> to vector<1x1x1x1xf32>
    %59 = vector.extract %58[0, 0, 0, 0] : f32 from vector<1x1x1x1xf32>
    %cst_13 = arith.constant 3.000000e+00 : f32
    %60 = arith.mulf %cst_13, %54 : f32
    %61 = arith.subf %60, %59 : f32
    %cst_14 = arith.constant 8.000000e+00 : f32
    %62 = arith.divf %61, %cst_14 : f32
    %cst_15 = arith.constant 5.000000e-01 : f32
    %63 = arith.mulf %62, %cst_15 : f32
    %cst_16 = arith.constant 2.000000e+00 : f32
    %64 = arith.mulf %63, %cst_16 : f32
    %cst_17 = arith.constant 2.000000e+00 : f32
    %65 = arith.mulf %64, %cst_17 : f32
    %cst_18 = arith.constant 1.200000e+01 : f32
    %66 = arith.divf %62, %cst_18 : f32
    %c0_19 = arith.constant 0 : index
    %c0_20 = arith.constant 0 : index
    %c0_21 = arith.constant 0 : index
    %67 = vector.load %arg1[%c0_19, %c0_20, %c0_21] : memref<4x4x128xf32, #tpu.memory_space<vmem>>, vector<4x4x128xf32>
    %68 = vector.extract_strided_slice %67 {offsets = [1, 0, 0], sizes = [3, 4, 128], strides = [1, 1, 1]} : vector<4x4x128xf32> to vector<3x4x128xf32>
    %69 = vector.extract_strided_slice %67 {offsets = [0, 0, 0], sizes = [1, 4, 128], strides = [1, 1, 1]} : vector<4x4x128xf32> to vector<1x4x128xf32>
    %70 = vector.broadcast %69 : vector<1x4x128xf32> to vector<3x4x128xf32>
    %71 = arith.subf %68, %70 : vector<3x4x128xf32>
    %72 = arith.mulf %71, %71 : vector<3x4x128xf32>
    %73 = vector.shape_cast %72 : vector<3x4x128xf32> to vector<1x3x4x128xf32>
    %cst_22 = arith.constant dense<0.000000e+00> : vector<1xf32>
    %74 = vector.multi_reduction <add>, %73, %cst_22 [1, 2, 3] : vector<1x3x4x128xf32> to vector<1xf32>
    %75 = vector.shape_cast %74 : vector<1xf32> to vector<1x1x1x1xf32>
    %76 = vector.extract %75[0, 0, 0, 0] : f32 from vector<1x1x1x1xf32>
    %cst_23 = arith.constant 5.120000e+02 : f32
    %77 = arith.divf %76, %cst_23 : f32
    %cst_24 = arith.constant 9.99999997E-7 : f32
    %78 = arith.mulf %77, %cst_24 : f32
    %79 = arith.addf %27, %65 : f32
    %80 = arith.addf %79, %29 : f32
    %81 = arith.addf %80, %78 : f32
    %c0_25 = arith.constant 0 : index
    %82 = memref.load %arg2[%c0_25] : memref<6xf32, #tpu.memory_space<smem>>
    memref.store %81, %arg2[%c0_25] : memref<6xf32, #tpu.memory_space<smem>>
    %c1 = arith.constant 1 : index
    %83 = memref.load %arg2[%c1] : memref<6xf32, #tpu.memory_space<smem>>
    memref.store %27, %arg2[%c1] : memref<6xf32, #tpu.memory_space<smem>>
    %c2 = arith.constant 2 : index
    %84 = memref.load %arg2[%c2] : memref<6xf32, #tpu.memory_space<smem>>
    memref.store %65, %arg2[%c2] : memref<6xf32, #tpu.memory_space<smem>>
    %c3 = arith.constant 3 : index
    %85 = memref.load %arg2[%c3] : memref<6xf32, #tpu.memory_space<smem>>
    memref.store %29, %arg2[%c3] : memref<6xf32, #tpu.memory_space<smem>>
    %c4 = arith.constant 4 : index
    %86 = memref.load %arg2[%c4] : memref<6xf32, #tpu.memory_space<smem>>
    memref.store %78, %arg2[%c4] : memref<6xf32, #tpu.memory_space<smem>>
    %c5 = arith.constant 5 : index
    %87 = memref.load %arg2[%c5] : memref<6xf32, #tpu.memory_space<smem>>
    memref.store %66, %arg2[%c5] : memref<6xf32, #tpu.memory_space<smem>>
    return
  }
}

</mosaic_0001>

<llo_original>
// kernel: fkd_loss.1
$region0: #{fkd_loss.1}
  #allocation0 [shape = 'u32[]', space=smem, size = 0x4, offset = 0x4, fixed_abs, tag = 'smem constant byte address 0x4 - core index']
  #allocation1 [shape = 'u32[144,128]{1,0:T(1,128)}', space=vmem, size = 0x12000, scoped, tag = 'internal scratch']
  %s0 = inlined_call_operand.vmem [shape: f32[6,2,4], index: 0, kind: input, shape index: {}]
  %s1 = inlined_call_operand.vmem [shape: f32[4,4,128], index: 1, kind: input, shape index: {}]
  %s2 = inlined_call_operand.hbm [shape: f32[6], index: 2, kind: output, shape index: {}]
  %s3 = sld [smem:[#allocation0]]
  $region18: #{fkd_loss.1} parent=0
    _
  %s5 = ssub.s32 1, %s3
  %s6 = scalar_select 0, %s5, %s3
  $region1: #{fkd_loss.1} parent=0
    #allocation2 [shape = 'u8[512]{0}', space=smem, size = 0x200, scoped, tag = 'output window, operand 0, single buffered']
    #allocation3 [shape = 's32[1]{0}', space=sflag, size = 0x4, scoped, tag = 'scoped memory for fkd_loss.1']
    %7 = vsyncpa [#allocation3], 0
    // Predicated region
    $region2: #{fkd_loss.1} parent=1 // pred_check
      _
    $region3: #{fkd_loss.1} parent=1 // pred_check_branch
      %9 = sbr.rel (0) target = $region5
    $region4: #{fkd_loss.1} parent=1 // pred_region
      _
    $region5: #{fkd_loss.1} parent=1 // pred_fallthru
      _
    // Predicated region
    $region6: #{fkd_loss.1} parent=1 // pred_check
      _
    $region7: #{fkd_loss.1} parent=1 // pred_check_branch
      %11 = sbr.rel (0) target = $region9
    $region8: #{fkd_loss.1} parent=1 // pred_region
      _
    $region9: #{fkd_loss.1} parent=1 // pred_fallthru
      _
    %v12 = vld [vmem:[%s0] sm:$0x3]
    %v13 = vld [vmem:[%s0 + $0x2] sm:$0x3]
    %v14 = vld [vmem:[%s0 + $0x4] sm:$0x3]
    %v15 = vld [vmem:[%s0 + $0x6] sm:$0x3]
    %v16 = vld [vmem:[%s0 + $0x8] sm:$0x3]
    %v17 = vld [vmem:[%s0 + $0xa] sm:$0x3]
    %v18 = vmax.f32 %v13, 0.0
    %v19 = vmax.f32 %v15, 0.0
    %v20 = vmax.f32 %v16, 0.0
    %v21 = vmax.f32 %v17, 0.0
    %v22 = vmul.f32 %v13, %v12
    %v23 = vmul.f32 %v15, %v12
    %v24 = vmul.f32 %v16, %v12
    %v25 = vmul.f32 %v17, %v12
    %v26 = vsub.f32 %v18, %v22
    %v27 = vsub.f32 %v19, %v23
    %v28 = vsub.f32 %v20, %v24
    %v29 = vsub.f32 %v21, %v25
    %v30 = vand.u32 2147483647, %v13
    %v31 = vand.u32 2147483647, %v15
    %v32 = vand.u32 2147483647, %v16
    %v33 = vand.u32 2147483647, %v17
    %v34 = vsub.f32 0.0, %v30
    %v35 = vsub.f32 0.0, %v31
    %v36 = vsub.f32 0.0, %v32
    %v37 = vsub.f32 0.0, %v33
    %v38 = vmul.f32 %v34, 1.442695
    %v39 = vpow.pop %v38
    %v40 = vmul.f32 %v35, 1.442695
    %v41 = vpow.pop %v40
    %v42 = vmul.f32 %v36, 1.442695
    %v43 = vpow.pop %v42
    %v44 = vmul.f32 %v37, 1.442695
    %v45 = vpow.pop %v44
    %v46 = vadd.f32 %v39, 1.0
    %v47 = vlog2.pop %v46
    %v48 = vmul.f32 %v47, 0.6931472
    %v49 = vmul.f32 -0.5, %v39
    %v50 = vadd.f32 %v49, 1.0
    %v51 = vmul.f32 %v50, %v39
    %v52 = vand.u32 2147483647, %v39
    %vm53 = vcmp.lt.f32.partialorder %v52, 0.0004427343
    %v54 = vsel %vm53, %v51, %v48
    %v55 = vadd.f32 %v41, 1.0
    %v56 = vlog2.pop %v55
    %v57 = vmul.f32 %v56, 0.6931472
    %v58 = vmul.f32 -0.5, %v41
    %v59 = vadd.f32 %v58, 1.0
    %v60 = vmul.f32 %v59, %v41
    %v61 = vand.u32 2147483647, %v41
    %vm62 = vcmp.lt.f32.partialorder %v61, 0.0004427343
    %v63 = vsel %vm62, %v60, %v57
    %v64 = vadd.f32 %v43, 1.0
    %v65 = vlog2.pop %v64
    %v66 = vmul.f32 %v65, 0.6931472
    %v67 = vmul.f32 -0.5, %v43
    %v68 = vadd.f32 %v67, 1.0
    %v69 = vmul.f32 %v68, %v43
    %v70 = vand.u32 2147483647, %v43
    %vm71 = vcmp.lt.f32.partialorder %v70, 0.0004427343
    %v72 = vsel %vm71, %v69, %v66
    %v73 = vadd.f32 %v45, 1.0
    %v74 = vlog2.pop %v73
    %v75 = vmul.f32 %v74, 0.6931472
    %v76 = vmul.f32 -0.5, %v45
    %v77 = vadd.f32 %v76, 1.0
    %v78 = vmul.f32 %v77, %v45
    %v79 = vand.u32 2147483647, %v45
    %vm80 = vcmp.lt.f32.partialorder %v79, 0.0004427343
    %v81 = vsel %vm80, %v78, %v75
    %v82 = vadd.f32 %v26, %v54
    %v83 = vadd.f32 %v27, %v63
    %v84 = vadd.f32 %v28, %v72
    %v85 = vadd.f32 %v29, %v81
    %vm86 = vcmask 25600
    %v87 = vsel %vm86, %v82, 0.0
    %88 = vadd.xlane.f32.xlu0 %v87
    %v89 = vpop.xlane.xlu0 %88
    %v90 = vrot.slane %v89, 4
    %v91 = vadd.f32 %v89, %v90
    %v92 = vrot.slane %v91, 2
    %v93 = vadd.f32 %v91, %v92
    %v94 = vrot.slane %v93, 1
    %v95 = vadd.f32 %v93, %v94
    %s96 = vtos %v95
    %v97 = vsel %vm86, %v83, 0.0
    %v98 = vsel %vm86, %v84, 0.0
    %v99 = vadd.f32 %v97, %v98
    %v100 = vsel %vm86, %v85, 0.0
    %v101 = vadd.f32 %v99, %v100
    %102 = vadd.xlane.f32.xlu0 %v101
    %v103 = vpop.xlane.xlu0 %102
    %v104 = vrot.slane %v103, 4
    %v105 = vadd.f32 %v103, %v104
    %v106 = vrot.slane %v105, 2
    %v107 = vadd.f32 %v105, %v106
    %v108 = vrot.slane %v107, 1
    %v109 = vadd.f32 %v107, %v108
    %s110 = vtos %v109
    %v111 = vrcp.pop 8.0
    %s112 = vtos %v111
    %s113 = smul.f32 %s96, %s112
    %s114 = smul.f32 %s110, 0.5
    %v115 = vrcp.pop 8.0
    %s116 = vtos %v115
    %s117 = smul.f32 %s114, %s116
    %v118 = vrcp.pop 2.0
    %v119 = vmul.f32 %v14, %v118
    %v120 = vmul.f32 %v15, %v118
    %v121 = vmul.f32 %v16, %v118
    %v122 = vmul.f32 %v17, %v118
    %v123 = vsel %vm86, %v119, -inf
    %124 = vmax.xlane.f32.xlu0 %v123
    %v125 = vpop.xlane.xlu0 %124
    %v126 = vsel %vm86, %v120, -inf
    %127 = vmax.xlane.f32.xlu0 %v126
    %v128 = vpop.xlane.xlu0 %127
    %v129 = vsel %vm86, %v121, -inf
    %130 = vmax.xlane.f32.xlu0 %v129
    %v131 = vpop.xlane.xlu0 %130
    %v132 = vsel %vm86, %v122, -inf
    %133 = vmax.xlane.f32.xlu0 %v132
    %v134 = vpop.xlane.xlu0 %133
    %v135 = vsub.f32 %v119, %v125
    %v136 = vsub.f32 %v120, %v128
    %v137 = vsub.f32 %v121, %v131
    %v138 = vsub.f32 %v122, %v134
    %v139 = vmul.f32 %v135, 1.442695
    %v140 = vpow.pop %v139
    %v141 = vmul.f32 %v136, 1.442695
    %v142 = vpow.pop %v141
    %v143 = vmul.f32 %v137, 1.442695
    %v144 = vpow.pop %v143
    %v145 = vmul.f32 %v138, 1.442695
    %v146 = vpow.pop %v145
    %v147 = vsel %vm86, %v140, 0.0
    %148 = vadd.xlane.f32.xlu0 %v147
    %v149 = vpop.xlane.xlu0 %148
    %v150 = vsel %vm86, %v142, 0.0
    %151 = vadd.xlane.f32.xlu0 %v150
    %v152 = vpop.xlane.xlu0 %151
    %v153 = vsel %vm86, %v144, 0.0
    %154 = vadd.xlane.f32.xlu0 %v153
    %v155 = vpop.xlane.xlu0 %154
    %v156 = vsel %vm86, %v146, 0.0
    %157 = vadd.xlane.f32.xlu0 %v156
    %v158 = vpop.xlane.xlu0 %157
    %v159 = vlog2.pop %v149
    %v160 = vmul.f32 %v159, 0.6931472
    %v161 = vlog2.pop %v152
    %v162 = vmul.f32 %v161, 0.6931472
    %v163 = vlog2.pop %v155
    %v164 = vmul.f32 %v163, 0.6931472
    %v165 = vlog2.pop %v158
    %v166 = vmul.f32 %v165, 0.6931472
    %v167 = vsub.f32 %v135, %v160
    %v168 = vsub.f32 %v136, %v162
    %v169 = vsub.f32 %v137, %v164
    %v170 = vsub.f32 %v138, %v166
    %v171 = vmul.f32 %v167, 1.442695
    %v172 = vpow.pop %v171
    %v173 = vmul.f32 %v172, %v167
    %v174 = vmul.f32 %v172, %v168
    %v175 = vmul.f32 %v172, %v169
    %v176 = vmul.f32 %v172, %v170
    %v177 = vsel %vm86, %v173, 0.0
    %178 = vadd.xlane.f32.xlu0 %v177
    %v179 = vpop.xlane.xlu0 %178
    %v180 = vrot.slane %v179, 4
    %v181 = vadd.f32 %v179, %v180
    %v182 = vrot.slane %v181, 2
    %v183 = vadd.f32 %v181, %v182
    %v184 = vrot.slane %v183, 1
    %v185 = vadd.f32 %v183, %v184
    %s186 = vtos %v185
    %v187 = vsel %vm86, %v174, 0.0
    %v188 = vsel %vm86, %v175, 0.0
    %v189 = vadd.f32 %v187, %v188
    %v190 = vsel %vm86, %v176, 0.0
    %v191 = vadd.f32 %v189, %v190
    %192 = vadd.xlane.f32.xlu0 %v191
    %v193 = vpop.xlane.xlu0 %192
    %v194 = vrot.slane %v193, 4
    %v195 = vadd.f32 %v193, %v194
    %v196 = vrot.slane %v195, 2
    %v197 = vadd.f32 %v195, %v196
    %v198 = vrot.slane %v197, 1
    %v199 = vadd.f32 %v197, %v198
    %s200 = vtos %v199
    %s201 = smul.f32 %s186, 3.0
    %s202 = ssub.f32 %s201, %s200
    %v203 = vrcp.pop 8.0
    %s204 = vtos %v203
    %s205 = smul.f32 %s202, %s204
    %s206 = smul.f32 %s205, 0.5
    %s207 = smul.f32 %s206, 2.0
    %s208 = smul.f32 %s207, 2.0
    %v209 = vrcp.pop 12.0
    %s210 = vtos %v209
    %s211 = smul.f32 %s205, %s210
    %v212 = vld [vmem:[%s1] sm:$0xf]
    %v213 = vld [vmem:[%s1 + $0x4] sm:$0xf]
    %v214 = vld [vmem:[%s1 + $0x8] sm:$0xf]
    %v215 = vld [vmem:[%s1 + $0xc] sm:$0xf]
    %v216 = vsub.f32 %v213, %v212
    %v217 = vsub.f32 %v214, %v212
    %v218 = vsub.f32 %v215, %v212
    %v219 = vmul.f32 %v216, %v216
    %v220 = vmul.f32 %v217, %v217
    %v221 = vmul.f32 %v218, %v218
    %vm222 = vcmask 1043456
    %v223 = vsel %vm222, %v219, 0.0
    %v224 = vsel %vm222, %v220, 0.0
    %v225 = vadd.f32 %v223, %v224
    %v226 = vsel %vm222, %v221, 0.0
    %v227 = vadd.f32 %v225, %v226
    %228 = vadd.xlane.f32.xlu0 %v227
    %v229 = vpop.xlane.xlu0 %228
    %v230 = vrot.slane %v229, 4
    %v231 = vadd.f32 %v229, %v230
    %v232 = vrot.slane %v231, 2
    %v233 = vadd.f32 %v231, %v232
    %v234 = vrot.slane %v233, 1
    %v235 = vadd.f32 %v233, %v234
    %s236 = vtos %v235
    %v237 = vrcp.pop 512.0
    %s238 = vtos %v237
    %s239 = smul.f32 %s236, %s238
    %s240 = smul.f32 %s239, 1e-06
    %s241 = sadd.f32 %s113, %s208
    %s242 = sadd.f32 %s241, %s117
    %s243 = sadd.f32 %s242, %s240
    %s244 = scalar_lea.smem [#allocation2], 0
    %245 = sst [smem:[%s244]] %s243
    %s246 = scalar_lea.smem [#allocation2], 1
    %247 = sst [smem:[%s246]] %s113
    %s248 = scalar_lea.smem [#allocation2], 2
    %249 = sst [smem:[%s248]] %s208
    %s250 = scalar_lea.smem [#allocation2], 3
    %251 = sst [smem:[%s250]] %s117
    %s252 = scalar_lea.smem [#allocation2], 4
    %253 = sst [smem:[%s252]] %s240
    %s254 = scalar_lea.smem [#allocation2], 5
    %255 = sst [smem:[%s254]] %s211
    // Predicated region
    $region10: #{fkd_loss.1} parent=1 // pred_check
      _
    $region11: #{fkd_loss.1} parent=1 // pred_check_branch
      %257 = sbr.rel (0) target = $region13
    $region12: #{fkd_loss.1} parent=1 // pred_region
      %s259 = ssub.s32 16, 16
      %260 = vsyncadd [#allocation3], %s259
      %263 = dma.smem_to_hbm [#allocation2], 16, %s2, [#allocation3]
    $region13: #{fkd_loss.1} parent=1 // pred_fallthru
      _
    // Predicated region
    $region14: #{fkd_loss.1} parent=1 // pred_check
      _
    $region15: #{fkd_loss.1} parent=1 // pred_check_branch
      %265 = sbr.rel (0) target = $region17
    $region16: #{fkd_loss.1} parent=1 // pred_region
      %266 = dma.done [#allocation3], 16
    $region17: #{fkd_loss.1} parent=1 // pred_fallthru
      _
    %267 = sfence
    %268 = vsyncpa [#allocation3], 1

</llo_original>
